<compile_context>
chip_gen: v5e
topology: v5e:2x2
jax: 0.10.0
libtpu: 0.0.40
codegen_flags: <defaults>
</compile_context>

<pallas_src>
import math

import jax
import jax.numpy as jnp
from jax import lax
from jax.experimental import pallas as pl
from jax.experimental.pallas import tpu as pltpu

# Per-block byte budget.  Pallas double-buffers both the input and the output
# block (~4x block bytes resident), so 2 MiB blocks leave ample headroom on
# every generation (v7x: 32 MiB default scoped VMEM / 64 MiB physical).
_BLOCK_BYTES_CAP = 2 * 1024 * 1024
_MAX_LANE_TILE = 2048  # lanes per block (multiple of 128), per perf guidance


def _largest_divisor_leq(n: int, cap: int) -> int:
    """Largest divisor of n that is <= cap (n >= 1)."""
    cap = max(1, min(n, cap))
    for d in range(cap, 0, -1):
        if n % d == 0:
            return d
    return 1


def _l2_norm_kernel(x_ref, o_ref):
    # x_ref / o_ref: (L_TILE, C, T_TILE) block in VMEM.  C is the reduction
    # (sublane) axis; T_TILE is the lane axis.
    x = x_ref[...]
    x32 = x.astype(jnp.float32)
    ssq = jnp.sum(x32 * x32, axis=1, keepdims=True)   # (L, 1, T) sublane-sum; C is tiny, no MXU
    inv = lax.rsqrt(ssq)                              # EUP: M rsqrt ops instead of C*M divides
    o_ref[...] = (x32 * inv).astype(o_ref.dtype)      # broadcast multiply on the VPU
    # TODO(synk): with C=4 the (C, T) slices half-fill 8-sublane vregs; packing
    # two lead elements per sublane tile (or an XLU rotate+add group reduction
    # on a (lead*C, T) view) would raise vreg occupancy, but the kernel is
    # memory-bound so the wall-clock effect is modest.


def l2_norm_forward(x, axis=1):
    """L2-normalize `x` along `axis` (default 1), matching the PyTorch module:
        norm = torch.norm(x, 2, axis, keepdim=True); out = x / norm
    """
    axis = axis % x.ndim
    shape = x.shape
    lead = math.prod(shape[:axis]) if axis > 0 else 1            # dims before the norm axis
    c = shape[axis]                                              # reduction length
    trail = math.prod(shape[axis + 1:]) if axis + 1 < x.ndim else 1  # dims after (lane axis)

    # TODO(synk): trail == 1 (normalizing the very last axis) puts the reduced
    # axis on a 1-wide lane dim; that path should transpose before the kernel.

    # Contiguous reshape only — no transpose / pad / extra HBM copies.
    x3 = x.reshape(lead, c, trail)
    itemsize = jnp.dtype(x.dtype).itemsize

    # --- trailing (lane) tile: multiple of 128, <= 2048 lanes, divides trail ---
    if trail % 128 == 0:
        t_tile = 128 * _largest_divisor_leq(trail // 128, _MAX_LANE_TILE // 128)
    else:
        # Full-extent block keeps correctness (allowed by the (8,128) rule);
        # stores become masked.
        # TODO(synk): pad trail up to a multiple of 128 on the wrapper side for
        # lane-dense stores on real workloads (e.g. 14x14 = 196 spatial).
        t_tile = trail

    # --- leading tile: fill the per-block byte budget, divides `lead` ---
    bytes_per_lead = max(1, c * t_tile * itemsize)
    l_tile = _largest_divisor_leq(lead, max(1, _BLOCK_BYTES_CAP // bytes_per_lead))

    grid = (lead // l_tile, pl.cdiv(trail, t_tile))

    out3 = pl.pallas_call(
        _l2_norm_kernel,
        out_shape=jax.ShapeDtypeStruct((lead, c, trail), x.dtype),
        grid_spec=pltpu.PrefetchScalarGridSpec(
            num_scalar_prefetch=0,
            grid=grid,
            in_specs=[pl.BlockSpec((l_tile, c, t_tile), lambda i, j: (i, 0, j))],
            out_specs=pl.BlockSpec((l_tile, c, t_tile), lambda i, j: (i, 0, j)),
        ),
        compiler_params=pltpu.CompilerParams(
            dimension_semantics=("parallel", "parallel")),
    )(x3)

    return out3.reshape(shape)


if __name__ == "__main__":
    key = jax.random.PRNGKey(0)

    def ref_l2(x, axis=1):
        # Same semantics as torch.norm(x, 2, axis, True); x / norm.
        return x / jnp.sqrt(jnp.sum(x * x, axis=axis, keepdims=True))

    # Primary shape from the module's typical use: NCHW activations,
    # batch=2, channels=4, 16x16 spatial, normalized over the channel axis.
    shapes = [
        (2, 4, 16, 16),   # toy shape -> single grid step holding the whole array
        (2, 4, 64, 64),   # exercises lane tiling -> 2 parallel blocks (v7x 2 TCs)
        (2, 4, 14, 14),   # non-128-multiple trail -> full-extent fallback path
    ]
    for i, shp in enumerate(shapes):
        x = jax.random.normal(jax.random.fold_in(key, i), shp, dtype=jnp.float32)
        out = l2_norm_forward(x, axis=1)
        jax.block_until_ready(out)

        ref = ref_l2(x, axis=1)
        assert out.shape == x.shape
        assert jnp.allclose(out, ref, atol=2e-6, rtol=2e-6), shp
        # Sanity: per-pixel channel vectors now have unit L2 norm.
        assert jnp.allclose(jnp.sqrt(jnp.sum(out * out, axis=1)), 1.0, atol=1e-5), shp

    print("KERNEL_OK")
</pallas_src>

<mosaic_0001>
module attributes {stable_mosaic.version = 11 : i64} {
  func.func @_l2_norm_kernel(%arg0: i32, %arg1: i32, %arg2: memref<2x4x256xf32, #tpu.memory_space<vmem>>, %arg3: memref<2x4x256xf32, #tpu.memory_space<vmem>>) attributes {dimension_semantics = [#tpu.dimension_semantics<parallel>, #tpu.dimension_semantics<parallel>], iteration_bounds = array<i64: 1, 1>, scalar_prefetch = 0 : i64, scratch_operands = 0 : i64, tpu.core_type = #tpu.core_type<tc>, window_params = [{transform_indices = @transform_0, window_bounds = array<i64: 2, 4, 256>}, {transform_indices = @transform_1, window_bounds = array<i64: 2, 4, 256>}]} {
    %c0 = arith.constant 0 : index
    %c0_0 = arith.constant 0 : index
    %c0_1 = arith.constant 0 : index
    %0 = vector.load %arg2[%c0, %c0_0, %c0_1] : memref<2x4x256xf32, #tpu.memory_space<vmem>>, vector<2x4x256xf32>
    %1 = arith.mulf %0, %0 : vector<2x4x256xf32>
    %cst = arith.constant dense<0.000000e+00> : vector<2x256xf32>
    %2 = vector.multi_reduction <add>, %1, %cst [1] : vector<2x4x256xf32> to vector<2x256xf32>
    %3 = vector.shape_cast %2 : vector<2x256xf32> to vector<2x1x256xf32>
    %4 = math.rsqrt %3 : vector<2x1x256xf32>
    %5 = vector.broadcast %4 : vector<2x1x256xf32> to vector<2x4x256xf32>
    %6 = arith.mulf %0, %5 : vector<2x4x256xf32>
    %c0_2 = arith.constant 0 : index
    %c0_3 = arith.constant 0 : index
    %c0_4 = arith.constant 0 : index
    %7 = vector.load %arg3[%c0_2, %c0_3, %c0_4] : memref<2x4x256xf32, #tpu.memory_space<vmem>>, vector<2x4x256xf32>
    tpu.vector_store %arg3[%c0_2, %c0_3, %c0_4], %6 {strides = array<i32>} : memref<2x4x256xf32, #tpu.memory_space<vmem>>, vector<2x4x256xf32>,
    return
  }
  func.func @transform_0(%arg0: i32, %arg1: i32) -> (i32, i32, i32) {
    %c0_i32 = arith.constant 0 : i32
    %c0_i32_0 = arith.constant 0 : i32
    return %arg0, %c0_i32, %arg1 : i32, i32, i32
  }
  func.func @transform_1(%arg0: i32, %arg1: i32) -> (i32, i32, i32) {
    %c0_i32 = arith.constant 0 : i32
    %c0_i32_0 = arith.constant 0 : i32
    return %arg0, %c0_i32, %arg1 : i32, i32, i32
  }
}

</mosaic_0001>

<llo_original>
// kernel: tpu_custom_call.1
$region0: #{tpu_custom_call.1}
  #allocation0 [shape = 'u32[]', space=smem, size = 0x4, offset = 0x4, fixed_abs, tag = 'smem constant byte address 0x4 - core index']
  #allocation1 [shape = 'u32[72,128]{1,0:T(1,128)}', space=vmem, size = 0x9000, scoped, tag = 'internal scratch']
  %s0 = inlined_call_operand.hbm [shape: f32[2,4,256], index: 0, kind: input, shape index: {}]
  %s1 = inlined_call_operand.hbm [shape: f32[2,4,256], index: 1, kind: output, shape index: {}]
  %s2 = sld [smem:[#allocation0]]
  $region18: #{tpu_custom_call.1} parent=0
    _
  %s4 = ssub.s32 1, %s2
  %s5 = scalar_select 0, %s4, %s2
  $region1: #{tpu_custom_call.1} parent=0
    #allocation2 [shape = 'u8[8192]{0}', space=vmem, size = 0x2000, scoped, tag = 'input window, operand 0, single buffered']
    #allocation3 [shape = 's32[1]{0}', space=sflag, size = 0x4, scoped, tag = 'scoped memory for tpu_custom_call.1']
    #allocation4 [shape = 's32[1]{0}', space=sflag, size = 0x4, scoped, tag = 'scoped memory for tpu_custom_call.1']
    #allocation5 [shape = 'u8[8192]{0}', space=vmem, size = 0x2000, scoped, tag = 'output window, operand 0, single buffered']
    %6 = vsyncpa [#allocation3], 0
    %7 = vsyncpa [#allocation4], 0
    // Predicated region
    $region2: #{tpu_custom_call.1} parent=1 // pred_check
      _
    $region3: #{tpu_custom_call.1} parent=1 // pred_check_branch
      %9 = sbr.rel (0) target = $region5
    $region4: #{tpu_custom_call.1} parent=1 // pred_region
      %11 = vsyncadd [#allocation3], 0
      %s12 = sshll.u32 %s0, 4
      %s13 = int_to_ptr.hbm [resolvable:$true] %s12
      %s14 = sshll.u32 [#allocation2], 4
      %s15 = int_to_ptr.vmem [resolvable:$true] %s14
      %20 = dma.hbm_to_vmem [thread:$0]  %s13, 256, %s15, [#allocation3], 128, 128, 8
    $region5: #{tpu_custom_call.1} parent=1 // pred_fallthru
      _
    // Predicated region
    $region6: #{tpu_custom_call.1} parent=1 // pred_check
      _
    $region7: #{tpu_custom_call.1} parent=1 // pred_check_branch
      %22 = sbr.rel (0) target = $region9
    $region8: #{tpu_custom_call.1} parent=1 // pred_region
      %24 = dma.done [#allocation3], 256
    $region9: #{tpu_custom_call.1} parent=1 // pred_fallthru
      _
    %v25 = vld [vmem:[#allocation2] sm:$0xff]
    %v26 = vld [vmem:[#allocation2 + $0x8] sm:$0xff]
    %v27 = vmul.f32 %v25, %v25
    %v28 = vmul.f32 %v26, %v26
    %31 = vst [vmem:[#allocation1] ss:$2 sm:$0xff] %v27
    %v32 = vld.sshfl [vmem:[#allocation1] sm:$0xff pattern:$0x75316420]
    %v33 = vld.sshfl [vmem:[#allocation1 + $0x8] sm:$0xff pattern:$0x75316420]
    %s34 = scalar_lea.vmem [#allocation1], 16
    %35 = vst [vmem:[%s34] ss:$2 sm:$0xff] %v28
    %v36 = vld.sshfl [vmem:[#allocation1 + $0x10] sm:$0xff pattern:$0x75316420]
    %v37 = vld.sshfl [vmem:[#allocation1 + $0x18] sm:$0xff pattern:$0x75316420]
    %vm42 = vcmask 1043456
    %v43 = vsel %vm42, %v32, 0.0
    %v44 = vrot.slane %v43, 4
    %v45 = vadd.f32 %v43, %v44
    %v46 = vrot.slane %v45, 2
    %v47 = vadd.f32 %v45, %v46
    %v48 = vrot.slane %v47, 1
    %v49 = vadd.f32 %v47, %v48
    %v50 = vsel %vm42, %v33, 0.0
    %v51 = vrot.slane %v50, 4
    %v52 = vadd.f32 %v50, %v51
    %v53 = vrot.slane %v52, 2
    %v54 = vadd.f32 %v52, %v53
    %v55 = vrot.slane %v54, 1
    %v56 = vadd.f32 %v54, %v55
    %v57 = vsel %vm42, %v36, 0.0
    %v58 = vrot.slane %v57, 4
    %v59 = vadd.f32 %v57, %v58
    %v60 = vrot.slane %v59, 2
    %v61 = vadd.f32 %v59, %v60
    %v62 = vrot.slane %v61, 1
    %v63 = vadd.f32 %v61, %v62
    %v64 = vsel %vm42, %v37, 0.0
    %v65 = vrot.slane %v64, 4
    %v66 = vadd.f32 %v64, %v65
    %v67 = vrot.slane %v66, 2
    %v68 = vadd.f32 %v66, %v67
    %v69 = vrot.slane %v68, 1
    %v70 = vadd.f32 %v68, %v69
    %v71 = vrsqrt.pop %v49
    %v72 = vmul.f32 %v71, %v49
    %v73 = vmul.f32 %v72, %v71
    %v74 = vmul.f32 0.5, %v73
    %v75 = vsub.f32 1.5, %v74
    %v76 = vmul.f32 %v71, %v75
    %vm77 = vweird.f32 %v49
    %vm78 = vweird.f32 %v71
    %vm79 = vmor %vm77, %vm78
    %v80 = vsel %vm79, %v71, %v76
    %v81 = vrsqrt.pop %v56
    %v82 = vmul.f32 %v81, %v56
    %v83 = vmul.f32 %v82, %v81
    %v84 = vmul.f32 0.5, %v83
    %v85 = vsub.f32 1.5, %v84
    %v86 = vmul.f32 %v81, %v85
    %vm87 = vweird.f32 %v56
    %vm88 = vweird.f32 %v81
    %vm89 = vmor %vm87, %vm88
    %v90 = vsel %vm89, %v81, %v86
    %v91 = vrsqrt.pop %v63
    %v92 = vmul.f32 %v91, %v63
    %v93 = vmul.f32 %v92, %v91
    %v94 = vmul.f32 0.5, %v93
    %v95 = vsub.f32 1.5, %v94
    %v96 = vmul.f32 %v91, %v95
    %vm97 = vweird.f32 %v63
    %vm98 = vweird.f32 %v91
    %vm99 = vmor %vm97, %vm98
    %v100 = vsel %vm99, %v91, %v96
    %v101 = vrsqrt.pop %v70
    %v102 = vmul.f32 %v101, %v70
    %v103 = vmul.f32 %v102, %v101
    %v104 = vmul.f32 0.5, %v103
    %v105 = vsub.f32 1.5, %v104
    %v106 = vmul.f32 %v101, %v105
    %vm107 = vweird.f32 %v70
    %vm108 = vweird.f32 %v101
    %vm109 = vmor %vm107, %vm108
    %v110 = vsel %vm109, %v101, %v106
    %v115 = vrot.slane %v90, 4
    %v116 = vrot.slane %v110, 4
    %v117 = vsel %vm42, %v80, %v115
    %v118 = vsel %vm42, %v100, %v116
    %v121 = vmul.f32 %v25, %v117
    %v122 = vmul.f32 %v26, %v118
    %123 = vst [vmem:[#allocation5] sm:$0xff] %v121
    %124 = vst [vmem:[#allocation5 + $0x8] sm:$0xff] %v122
    // Predicated region
    $region10: #{tpu_custom_call.1} parent=1 // pred_check
      _
    $region11: #{tpu_custom_call.1} parent=1 // pred_check_branch
      %126 = sbr.rel (0) target = $region13
    $region12: #{tpu_custom_call.1} parent=1 // pred_region
      %128 = vsyncadd [#allocation4], 0
      %s129 = sshll.u32 [#allocation5], 4
      %s130 = int_to_ptr.vmem [resolvable:$true] %s129
      %s131 = sshll.u32 %s1, 4
      %s132 = int_to_ptr.hbm [resolvable:$true] %s131
      %137 = dma.vmem_to_hbm [thread:$0]  %s130, 256, %s132, [#allocation4], 128, 128, 8
    $region13: #{tpu_custom_call.1} parent=1 // pred_fallthru
      _
    // Predicated region
    $region14: #{tpu_custom_call.1} parent=1 // pred_check
      _
    $region15: #{tpu_custom_call.1} parent=1 // pred_check_branch
      %139 = sbr.rel (0) target = $region17
    $region16: #{tpu_custom_call.1} parent=1 // pred_region
      %141 = dma.done [#allocation4], 256
    $region17: #{tpu_custom_call.1} parent=1 // pred_fallthru
      _
    %142 = vsyncpa [#allocation3], 1
    %143 = vsyncpa [#allocation4], 1

</llo_original>
